<compile_context>
chip_gen: v6e
topology: v6e:2x2x1
jax: 0.10.0
libtpu: 0.0.40
codegen_flags: <defaults>
</compile_context>

<pallas_src>
import numpy as np
import jax
import jax.numpy as jnp
from jax.experimental import pallas as pl
from jax.experimental.pallas import tpu as pltpu

EPS = 1e-5


def _round_up(x, m):
    return ((x + m - 1) // m) * m


# ----------------------------- Pallas kernel -------------------------------
def _make_kernel(*, Cin_p, Cout_p, K, S, Kp, TL, TE, HW, L, Lout,
                 W0, Ec, Ep, P2L, mxu_dtype, wide_conv2):
    """One grid step: output positions [t*TL, (t+1)*TL) of one batch row."""
    W = TL + HW                               # in-VMEM window width (phase columns)

    def kernel(xm_ref, xh_ref, inv1_ref, sh1_ref, w1_ref, b1_ref,
               w2_ref, b2_ref, out_ref):
        t = pl.program_id(1)
        c0 = t * (TL * S) + W0                # original coord of window col 0, phase 0

        col = jax.lax.broadcasted_iota(jnp.int32, (1, W), 1)
        inv1 = inv1_ref[...]
        sh1 = sh1_ref[...]

        # ---- per-stride-phase window: raw (identity pool) and bn1+relu1+mask ----
        raw, act = [], []
        for r in range(S):
            xr = jnp.concatenate(
                [xm_ref[r * Cin_p:(r + 1) * Cin_p, :],
                 xh_ref[r * Cin_p:(r + 1) * Cin_p, :]], axis=1)       # (Cin_p, W)
            raw.append(xr)
            a = jnp.maximum(xr * inv1 + sh1, 0.0)
            # PyTorch zero-pads AFTER bn1+relu1 -> zero positions outside [0, L).
            # ONE mask per phase (not per conv tap).
            # TODO(synk): this single select pass could be gated on boundary
            # tiles with pl.when; it is identity for interior tiles.
            pos = c0 + r + col * S
            act.append(jnp.where((pos >= 0) & (pos < L), a, 0.0))

        # ---- conv1 (+ folded bn2 + conv1 bias) as ONE wide-contraction matmul ----
        taps1 = []
        for k in range(K):
            d = k + Ec
            taps1.append(act[d % S][:, d // S:d // S + TE])           # (Cin_p, TE)
        im1 = jnp.concatenate(taps1, axis=0).astype(mxu_dtype)        # (K*Cin_p, TE)
        h = jnp.dot(w1_ref[...], im1,
                    preferred_element_type=jnp.float32) + b1_ref[...]
        h = jnp.maximum(h, 0.0)                                       # relu2
        # conv2 SAME zero pad: zero conv1 outputs outside [0, Lout)
        me = t * TL - P2L + jax.lax.broadcasted_iota(jnp.int32, (1, TE), 1)
        h = jnp.where((me >= 0) & (me < Lout), h, 0.0)                # (Cout_p, TE)

        # ---- identity path: SAME max-pool (zero padded, torch-style) ------------
        d = Ep
        ident = raw[d % S][:, d // S:d // S + TL]                     # (Cin_p, TL)
        for s in range(1, Kp):
            d = s + Ep
            ident = jnp.maximum(ident, raw[d % S][:, d // S:d // S + TL])

        # ---- conv2 + channel-placed identity folded into one contraction --------
        h = h.astype(mxu_dtype)
        identc = ident.astype(mxu_dtype)
        if wide_conv2:
            im2 = jnp.concatenate(
                [h[:, k:k + TL] for k in range(K)] + [identc], axis=0)
            y = jnp.dot(w2_ref[...], im2, preferred_element_type=jnp.float32)
        else:
            # Cout_pad >= 128: accumulate per-tap dots, skip the im2 buffer.
            y = jnp.dot(w2_ref[:, K * Cout_p:K * Cout_p + Cin_p], identc,
                        preferred_element_type=jnp.float32)
            for k in range(K):
                y = y + jnp.dot(w2_ref[:, k * Cout_p:(k + 1) * Cout_p],
                                h[:, k:k + TL],
                                preferred_element_type=jnp.float32)
        out_ref[...] = (y + b2_ref[...]).astype(out_ref.dtype)

    return kernel


# ------------------------------- wrapper ------------------------------------
def basic_block_forward(x_ncl, params, *, kernel_size, stride, downsample,
                        tile_l=None, mxu_dtype=jnp.float32):
    """Eval-mode BasicBlock forward (use_bn=True, use_do=False,
    is_first_block=False, groups=1).  Set mxu_dtype=jnp.bfloat16 on v6e/v7x
    for MXU-native matmul operands (f32 accumulation either way)."""
    B, Cin, L = x_ncl.shape
    K = kernel_size
    S = stride if downsample else 1
    Kp = S                                   # pool kernel == conv stride
    Cout = params["w1"].shape[0]
    assert Cout >= Cin, "channel crop (Cout < Cin) not supported"

    # SAME geometry (MyConv1dPadSame / MyMaxPool1dPadSame)
    Lout = -(-L // S)
    p1 = max(0, (Lout - 1) * S + K - L)
    pl1 = p1 // 2                            # conv1 left pad
    P2L = (K - 1) // 2                       # conv2 (stride 1) SAME left pad
    ppl = (Kp - 1) // 2                      # pool SAME left pad

    # window origin / tap offsets in phase-decomposed coordinates
    W0 = min(-P2L * S - pl1, -ppl)
    Ec = -P2L * S - pl1 - W0                 # conv1 tap-0 offset (>= 0)
    Ep = -ppl - W0                           # pool tap-0 offset  (>= 0)
    halo_cols = max(K - 1 + (K - 1 + Ec) // S, (Kp - 1 + Ep) // S)
    HW = _round_up(max(halo_cols, 1), 128)   # halo block width (lane dense)

    Cin_p = _round_up(Cin, 8)
    Cout_p = _round_up(Cout, 8)
    SC = S * Cin_p
    wide_conv2 = Cout_p < 128

    # ---- tile size: biggest lane-dense tile that fits a conservative VMEM budget
    def vmem_est(tl):
        w = tl + HW
        te = tl + K - 1
        words = (2 * SC * (tl + HW)                 # double-buffered input blocks
                 + 2 * Cout_p * tl                  # double-buffered output block
                 + 2 * S * Cin_p * w                # raw + masked act phases
                 + K * Cin_p * te                   # im1
                 + 2 * Cout_p * te                  # h (+ masked copy)
                 + (K * Cout_p + Cin_p) * tl        # im2 / tap slices
                 + 2 * Cout_p * tl                  # y + store staging
                 + Cin_p * tl)                      # pooled identity
        return int(words * 4 * 1.4)

    if tile_l is not None:
        TL = _round_up(tile_l, HW)
    else:
        TL = HW
        for cand in (8192, 4096, 2048, 1024, 512, 256, 128):
            if cand % HW == 0 and vmem_est(cand) <= (28 << 20):
                TL = cand
                break
    TL = max(HW, min(TL, _round_up(Lout, HW)))
    nLt = -(-Lout // TL)
    TE = TL + K - 1
    Lph = nLt * TL + HW                      # phase-array columns
    Lpad = Lph * S                           # padded original length

    # ---- single zero-pad (+ one phase reshape/transpose when S > 1); no gather --
    x32 = x_ncl.astype(jnp.float32)
    left = -W0
    right = Lpad - L - left
    assert right >= 0
    xpad = jnp.pad(x32, ((0, 0), (0, Cin_p - Cin), (left, right)))
    if S == 1:
        xph = xpad                                            # (B, Cin_p, Lph)
    else:
        xph = (xpad.reshape(B, Cin_p, Lph, S)
               .transpose(0, 3, 1, 2)
               .reshape(B, SC, Lph))                          # row = r*Cin_p + c

    # ---- BN -> affine; fold bn2 + conv1 bias into conv1 weight/bias -------------
    inv1 = params["g1"] * jax.lax.rsqrt(params["v1"] + EPS)
    sh1 = params["be1"] - params["m1"] * inv1
    inv2 = params["g2"] * jax.lax.rsqrt(params["v2"] + EPS)
    sh2 = params["be2"] - params["m2"] * inv2
    inv1_c = jnp.pad(inv1, (0, Cin_p - Cin)).reshape(Cin_p, 1)
    sh1_c = jnp.pad(sh1, (0, Cin_p - Cin)).reshape(Cin_p, 1)

    w1 = jnp.transpose(params["w1"], (0, 2, 1))               # (Cout, K, Cin)
    w1 = jnp.pad(w1, ((0, Cout_p - Cout), (0, 0), (0, Cin_p - Cin)))
    w1 = w1 * jnp.pad(inv2, (0, Cout_p - Cout))[:, None, None]
    w1f = w1.reshape(Cout_p, K * Cin_p)
    b1f = jnp.pad(params["b1c"] * inv2 + sh2,
                  (0, Cout_p - Cout)).reshape(Cout_p, 1)

    w2 = jnp.transpose(params["w2"], (0, 2, 1))               # (Cout, K, Cout)
    w2 = jnp.pad(w2, ((0, Cout_p - Cout), (0, 0), (0, Cout_p - Cout)))
    w2f = w2.reshape(Cout_p, K * Cout_p)
    ch1 = (Cout - Cin) // 2 if Cout != Cin else 0
    proj = jnp.zeros((Cout_p, Cin_p), jnp.float32)
    proj = proj.at[jnp.arange(Cin) + ch1, jnp.arange(Cin)].set(1.0)
    w2aug = jnp.concatenate([w2f, proj], axis=1)              # (Cout_p, K*Cout_p+Cin_p)
    b2f = jnp.pad(params["b2c"], (0, Cout_p - Cout)).reshape(Cout_p, 1)

    w1f = w1f.astype(mxu_dtype)
    w2aug = w2aug.astype(mxu_dtype)

    kernel = _make_kernel(Cin_p=Cin_p, Cout_p=Cout_p, K=K, S=S, Kp=Kp, TL=TL,
                          TE=TE, HW=HW, L=L, Lout=Lout, W0=W0, Ec=Ec, Ep=Ep,
                          P2L=P2L, mxu_dtype=mxu_dtype, wide_conv2=wide_conv2)

    ratio = TL // HW
    flops = 2 * B * nLt * (K * Cin_p * Cout_p * TE
                           + (K * Cout_p + Cin_p) * Cout_p * TL)
    bytes_acc = 4 * (B * SC * (Lph + nLt * HW) + B * Cout_p * nLt * TL
                     + w1f.size + w2aug.size + 2 * Cin_p + 2 * Cout_p)
    vmem_limit = int(min(48 << 20, max(32 << 20, vmem_est(TL) + (12 << 20))))

    out_pad = pl.pallas_call(
        kernel,
        grid=(B, nLt),
        in_specs=[
            # per-tile window: TL-wide main block + 128-wide halo block, both
            # auto-pipelined by Pallas (double-buffered DMA).
            pl.BlockSpec((None, SC, TL), lambda b, t: (b, 0, t)),
            pl.BlockSpec((None, SC, HW), lambda b, t: (b, 0, (t + 1) * ratio)),
            # small VMEM-resident operands (constant index maps)
            pl.BlockSpec((Cin_p, 1), lambda b, t: (0, 0)),
            pl.BlockSpec((Cin_p, 1), lambda b, t: (0, 0)),
            pl.BlockSpec((Cout_p, K * Cin_p), lambda b, t: (0, 0)),
            pl.BlockSpec((Cout_p, 1), lambda b, t: (0, 0)),
            pl.BlockSpec((Cout_p, K * Cout_p + Cin_p), lambda b, t: (0, 0)),
            pl.BlockSpec((Cout_p, 1), lambda b, t: (0, 0)),
        ],
        out_specs=pl.BlockSpec((None, Cout_p, TL), lambda b, t: (b, 0, t)),
        out_shape=jax.ShapeDtypeStruct((B, Cout_p, nLt * TL), jnp.float32),
        compiler_params=pltpu.CompilerParams(
            dimension_semantics=("parallel", "parallel"),
            vmem_limit_bytes=vmem_limit),
        cost_estimate=pl.CostEstimate(flops=int(flops), transcendentals=0,
                                      bytes_accessed=int(bytes_acc)),
    )(xph, xph, inv1_c, sh1_c, w1f, b1f, w2aug, b2f)

    # output already in (B, Cout_pad, nLt*TL) NCL layout; just crop the padding.
    return out_pad[:, :Cout, :Lout]


# ------------------------- pure-JAX reference --------------------------------
def _bn(x, g, b, m, v):
    return (x - m[None, :, None]) * (g / jnp.sqrt(v + EPS))[None, :, None] \
        + b[None, :, None]


def _conv1d_same(x, w, b, stride):
    K = w.shape[-1]
    L = x.shape[-1]
    out_dim = -(-L // stride)
    p = max(0, (out_dim - 1) * stride + K - L)
    xp = jnp.pad(x, ((0, 0), (0, 0), (p // 2, p - p // 2)))
    y = jax.lax.conv_general_dilated(
        xp, w, (stride,), "VALID",
        dimension_numbers=("NCH", "OIH", "NCH"),
        precision=jax.lax.Precision.HIGHEST)
    return y + b[None, :, None]


def _maxpool_same(x, k):
    p = k - 1
    xp = jnp.pad(x, ((0, 0), (0, 0), (p // 2, p - p // 2)))      # zero pad (torch)
    return jax.lax.reduce_window(xp, -jnp.inf, jax.lax.max,
                                 (1, 1, k), (1, 1, k), "VALID")


def basic_block_reference(x, params, *, kernel_size, stride, downsample):
    S = stride if downsample else 1
    out = _bn(x, params["g1"], params["be1"], params["m1"], params["v1"])
    out = jnp.maximum(out, 0.0)
    out = _conv1d_same(out, params["w1"], params["b1c"], S)
    out = _bn(out, params["g2"], params["be2"], params["m2"], params["v2"])
    out = jnp.maximum(out, 0.0)
    out = _conv1d_same(out, params["w2"], params["b2c"], 1)
    identity = x
    if downsample:
        identity = _maxpool_same(identity, S)
    Cin, Cout = x.shape[1], out.shape[1]
    if Cout != Cin:
        ch1 = (Cout - Cin) // 2
        identity = jnp.pad(identity, ((0, 0), (ch1, Cout - Cin - ch1), (0, 0)))
    return out + identity


# --------------------------------- main --------------------------------------
if __name__ == "__main__":
    def make_params(key, Cin, Cout, K):
        ks = jax.random.split(key, 12)
        return {
            "w1": jax.random.normal(ks[0], (Cout, Cin, K), jnp.float32) * 0.3,
            "b1c": jax.random.normal(ks[1], (Cout,), jnp.float32) * 0.1,
            "w2": jax.random.normal(ks[2], (Cout, Cout, K), jnp.float32) * 0.3,
            "b2c": jax.random.normal(ks[3], (Cout,), jnp.float32) * 0.1,
            "g1": jax.random.normal(ks[4], (Cin,), jnp.float32) * 0.1 + 1.0,
            "be1": jax.random.normal(ks[5], (Cin,), jnp.float32) * 0.1,
            "m1": jax.random.normal(ks[6], (Cin,), jnp.float32) * 0.1,
            "v1": jnp.abs(jax.random.normal(ks[7], (Cin,), jnp.float32)) * 0.5 + 0.5,
            "g2": jax.random.normal(ks[8], (Cout,), jnp.float32) * 0.1 + 1.0,
            "be2": jax.random.normal(ks[9], (Cout,), jnp.float32) * 0.1,
            "m2": jax.random.normal(ks[10], (Cout,), jnp.float32) * 0.1,
            "v2": jnp.abs(jax.random.normal(ks[11], (Cout,), jnp.float32)) * 0.5 + 0.5,
        }

    k1, k2, k3, k4, k5, k6 = jax.random.split(jax.random.PRNGKey(0), 6)

    # -- config 1: downsample + channel expansion (primary test) ------------------
    B, Cin, Cout, L, K, stride = 2, 4, 8, 16, 3, 2
    params = make_params(k1, Cin, Cout, K)
    x = jax.random.normal(k2, (B, Cin, L), jnp.float32)
    out = jax.block_until_ready(
        basic_block_forward(x, params, kernel_size=K, stride=stride, downsample=True))
    ref = jax.block_until_ready(
        basic_block_reference(x, params, kernel_size=K, stride=stride, downsample=True))
    assert out.shape == (B, Cout, -(-L // stride))
    np.testing.assert_allclose(np.asarray(out), np.asarray(ref), atol=1e-3, rtol=1e-3)

    # bf16 MXU operands (recommended for v6e/v7x), f32 accumulation; loose tol.
    out_bf = jax.block_until_ready(
        basic_block_forward(x, params, kernel_size=K, stride=stride,
                            downsample=True, mxu_dtype=jnp.bfloat16))
    np.testing.assert_allclose(np.asarray(out_bf), np.asarray(ref),
                               atol=3e-1, rtol=1e-1)

    # -- config 2: no downsample, equal channels (stride-1 / identity passthrough) --
    B2, C2, L2, K2 = 2, 8, 300, 5
    params2 = make_params(k3, C2, C2, K2)
    x2 = jax.random.normal(k4, (B2, C2, L2), jnp.float32)
    out2 = jax.block_until_ready(
        basic_block_forward(x2, params2, kernel_size=K2, stride=2, downsample=False))
    ref2 = jax.block_until_ready(
        basic_block_reference(x2, params2, kernel_size=K2, stride=2, downsample=False))
    assert out2.shape == (B2, C2, L2)
    np.testing.assert_allclose(np.asarray(out2), np.asarray(ref2), atol=2e-3, rtol=2e-3)

    # -- config 3: larger channels (exercises the per-tap conv2 path, Cout>=128) ---
    B3, Ci3, Co3, L3, K3, s3 = 2, 64, 128, 384, 3, 2
    params3 = make_params(k5, Ci3, Co3, K3)
    x3 = jax.random.normal(k6, (B3, Ci3, L3), jnp.float32)
    out3 = jax.block_until_ready(
        basic_block_forward(x3, params3, kernel_size=K3, stride=s3, downsample=True))
    ref3 = jax.block_until_ready(
        basic_block_reference(x3, params3, kernel_size=K3, stride=s3, downsample=True))
    assert out3.shape == (B3, Co3, -(-L3 // s3))
    np.testing.assert_allclose(np.asarray(out3), np.asarray(ref3), atol=5e-3, rtol=5e-3)

    print("KERNEL_OK")
</pallas_src>

<mosaic_0001>
module attributes {stable_mosaic.version = 11 : i64} {
  func.func @kernel(%arg0: i32, %arg1: i32, %arg2: memref<1x16x128xf32, #tpu.memory_space<vmem>>, %arg3: memref<1x16x128xf32, #tpu.memory_space<vmem>>, %arg4: memref<8x1xf32, #tpu.memory_space<vmem>>, %arg5: memref<8x1xf32, #tpu.memory_space<vmem>>, %arg6: memref<8x24xf32, #tpu.memory_space<vmem>>, %arg7: memref<8x1xf32, #tpu.memory_space<vmem>>, %arg8: memref<8x32xf32, #tpu.memory_space<vmem>>, %arg9: memref<8x1xf32, #tpu.memory_space<vmem>>, %arg10: memref<1x8x128xf32, #tpu.memory_space<vmem>>) attributes {dimension_semantics = [#tpu.dimension_semantics<parallel>, #tpu.dimension_semantics<parallel>], iteration_bounds = array<i64: 2, 1>, scalar_prefetch = 0 : i64, scratch_operands = 0 : i64, tpu.core_type = #tpu.core_type<tc>, window_params = [{transform_indices = @transform_0, window_bounds = array<i64: 1, 16, 128>}, {transform_indices = @transform_1, window_bounds = array<i64: 1, 16, 128>}, {pipeline_mode = #tpu.pipeline_mode<synchronous>, transform_indices = @transform_2, window_bounds = array<i64: 8, 1>}, {pipeline_mode = #tpu.pipeline_mode<synchronous>, transform_indices = @transform_3, window_bounds = array<i64: 8, 1>}, {pipeline_mode = #tpu.pipeline_mode<synchronous>, transform_indices = @transform_4, window_bounds = array<i64: 8, 24>}, {pipeline_mode = #tpu.pipeline_mode<synchronous>, transform_indices = @transform_5, window_bounds = array<i64: 8, 1>}, {pipeline_mode = #tpu.pipeline_mode<synchronous>, transform_indices = @transform_6, window_bounds = array<i64: 8, 32>}, {pipeline_mode = #tpu.pipeline_mode<synchronous>, transform_indices = @transform_7, window_bounds = array<i64: 8, 1>}, {transform_indices = @transform_8, window_bounds = array<i64: 1, 8, 128>}]} {
    %c256_i32 = arith.constant 256 : i32
    %0 = arith.muli %arg1, %c256_i32 : i32
    %c-2_i32 = arith.constant -2 : i32
    %1 = arith.addi %0, %c-2_i32 : i32
    %2 = tpu.iota {dimensions = array<i32: 1>} : vector<1x256xi32>
    %c0 = arith.constant 0 : index
    %c0_0 = arith.constant 0 : index
    %3 = vector.load %arg4[%c0, %c0_0] : memref<8x1xf32, #tpu.memory_space<vmem>>, vector<8x1xf32>
    %c0_1 = arith.constant 0 : index
    %c0_2 = arith.constant 0 : index
    %4 = vector.load %arg5[%c0_1, %c0_2] : memref<8x1xf32, #tpu.memory_space<vmem>>, vector<8x1xf32>
    %c0_3 = arith.constant 0 : index
    %c0_4 = arith.constant 0 : index
    %c0_5 = arith.constant 0 : index
    %5 = vector.load %arg2[%c0_3, %c0_4, %c0_5] : memref<1x16x128xf32, #tpu.memory_space<vmem>>, vector<1x8x128xf32>
    %6 = vector.shape_cast %5 : vector<1x8x128xf32> to vector<8x128xf32>
    %c0_6 = arith.constant 0 : index
    %c0_7 = arith.constant 0 : index
    %c0_8 = arith.constant 0 : index
    %7 = vector.load %arg3[%c0_6, %c0_7, %c0_8] : memref<1x16x128xf32, #tpu.memory_space<vmem>>, vector<1x8x128xf32>
    %8 = vector.shape_cast %7 : vector<1x8x128xf32> to vector<8x128xf32>
    %9 = tpu.concatenate %6, %8 in 1 : vector<8x128xf32>, vector<8x128xf32> -> vector<8x256xf32>
    %10 = vector.broadcast %3 : vector<8x1xf32> to vector<8x256xf32>
    %11 = arith.mulf %9, %10 : vector<8x256xf32>
    %12 = vector.broadcast %4 : vector<8x1xf32> to vector<8x256xf32>
    %13 = arith.addf %11, %12 : vector<8x256xf32>
    %cst = arith.constant 0.000000e+00 : f32
    %14 = vector.broadcast %cst : f32 to vector<8x256xf32>
    %15 = arith.maximumf %13, %14 : vector<8x256xf32>
    %c0_i32 = arith.constant 0 : i32
    %16 = arith.addi %1, %c0_i32 : i32
    %c2_i32 = arith.constant 2 : i32
    %17 = vector.broadcast %c2_i32 : i32 to vector<1x256xi32>
    %18 = arith.muli %2, %17 : vector<1x256xi32>
    %19 = vector.broadcast %16 : i32 to vector<1x256xi32>
    %20 = arith.addi %19, %18 : vector<1x256xi32>
    %c0_i32_9 = arith.constant 0 : i32
    %21 = vector.broadcast %c0_i32_9 : i32 to vector<1x256xi32>
    %22 = arith.cmpi sge, %20, %21 : vector<1x256xi32>
    %c16_i32 = arith.constant 16 : i32
    %23 = vector.broadcast %c16_i32 : i32 to vector<1x256xi32>
    %24 = arith.cmpi slt, %20, %23 : vector<1x256xi32>
    %25 = arith.andi %22, %24 : vector<1x256xi1>
    %cst_10 = arith.constant 0.000000e+00 : f32
    %26 = vector.shape_cast %25 : vector<1x256xi1> to vector<1x256xi1>
    %27 = vector.broadcast %26 : vector<1x256xi1> to vector<8x256xi1>
    %28 = vector.broadcast %cst_10 : f32 to vector<8x256xf32>
    %29 = arith.select %27, %15, %28 : vector<8x256xi1>, vector<8x256xf32>
    %c0_11 = arith.constant 0 : index
    %c8 = arith.constant 8 : index
    %c0_12 = arith.constant 0 : index
    %30 = vector.load %arg2[%c0_11, %c8, %c0_12] : memref<1x16x128xf32, #tpu.memory_space<vmem>>, vector<1x8x128xf32>
    %31 = vector.shape_cast %30 : vector<1x8x128xf32> to vector<8x128xf32>
    %c0_13 = arith.constant 0 : index
    %c8_14 = arith.constant 8 : index
    %c0_15 = arith.constant 0 : index
    %32 = vector.load %arg3[%c0_13, %c8_14, %c0_15] : memref<1x16x128xf32, #tpu.memory_space<vmem>>, vector<1x8x128xf32>
    %33 = vector.shape_cast %32 : vector<1x8x128xf32> to vector<8x128xf32>
    %34 = tpu.concatenate %31, %33 in 1 : vector<8x128xf32>, vector<8x128xf32> -> vector<8x256xf32>
    %35 = vector.broadcast %3 : vector<8x1xf32> to vector<8x256xf32>
    %36 = arith.mulf %34, %35 : vector<8x256xf32>
    %37 = vector.broadcast %4 : vector<8x1xf32> to vector<8x256xf32>
    %38 = arith.addf %36, %37 : vector<8x256xf32>
    %cst_16 = arith.constant 0.000000e+00 : f32
    %39 = vector.broadcast %cst_16 : f32 to vector<8x256xf32>
    %40 = arith.maximumf %38, %39 : vector<8x256xf32>
    %c1_i32 = arith.constant 1 : i32
    %41 = arith.addi %1, %c1_i32 : i32
    %c2_i32_17 = arith.constant 2 : i32
    %42 = vector.broadcast %c2_i32_17 : i32 to vector<1x256xi32>
    %43 = arith.muli %2, %42 : vector<1x256xi32>
    %44 = vector.broadcast %41 : i32 to vector<1x256xi32>
    %45 = arith.addi %44, %43 : vector<1x256xi32>
    %c0_i32_18 = arith.constant 0 : i32
    %46 = vector.broadcast %c0_i32_18 : i32 to vector<1x256xi32>
    %47 = arith.cmpi sge, %45, %46 : vector<1x256xi32>
    %c16_i32_19 = arith.constant 16 : i32
    %48 = vector.broadcast %c16_i32_19 : i32 to vector<1x256xi32>
    %49 = arith.cmpi slt, %45, %48 : vector<1x256xi32>
    %50 = arith.andi %47, %49 : vector<1x256xi1>
    %cst_20 = arith.constant 0.000000e+00 : f32
    %51 = vector.shape_cast %50 : vector<1x256xi1> to vector<1x256xi1>
    %52 = vector.broadcast %51 : vector<1x256xi1> to vector<8x256xi1>
    %53 = vector.broadcast %cst_20 : f32 to vector<8x256xf32>
    %54 = arith.select %52, %40, %53 : vector<8x256xi1>, vector<8x256xf32>
    %55 = vector.extract_strided_slice %29 {offsets = [0, 0], sizes = [8, 130], strides = [1, 1]} : vector<8x256xf32> to vector<8x130xf32>
    %56 = vector.extract_strided_slice %54 {offsets = [0, 0], sizes = [8, 130], strides = [1, 1]} : vector<8x256xf32> to vector<8x130xf32>
    %57 = vector.extract_strided_slice %29 {offsets = [0, 1], sizes = [8, 130], strides = [1, 1]} : vector<8x256xf32> to vector<8x130xf32>
    %58 = tpu.concatenate %55, %56, %57 in 0 : vector<8x130xf32>, vector<8x130xf32>, vector<8x130xf32> -> vector<24x130xf32>
    %c0_21 = arith.constant 0 : index
    %c0_22 = arith.constant 0 : index
    %59 = vector.load %arg6[%c0_21, %c0_22] : memref<8x24xf32, #tpu.memory_space<vmem>>, vector<8x24xf32>
    %cst_23 = arith.constant dense<0.000000e+00> : vector<8x130xf32>
    %60 = tpu.matmul %59, %58, %cst_23 {dimension_numbers = #tpu.dot_dimension_numbers<[1], [0], [0], [1], [0, 0, 1, 1], [], []>} : vector<8x24xf32>, vector<24x130xf32>, vector<8x130xf32> -> vector<8x130xf32>
    %c0_24 = arith.constant 0 : index
    %c0_25 = arith.constant 0 : index
    %61 = vector.load %arg7[%c0_24, %c0_25] : memref<8x1xf32, #tpu.memory_space<vmem>>, vector<8x1xf32>
    %62 = vector.broadcast %61 : vector<8x1xf32> to vector<8x130xf32>
    %63 = arith.addf %60, %62 : vector<8x130xf32>
    %cst_26 = arith.constant 0.000000e+00 : f32
    %64 = vector.broadcast %cst_26 : f32 to vector<8x130xf32>
    %65 = arith.maximumf %63, %64 : vector<8x130xf32>
    %c128_i32 = arith.constant 128 : i32
    %66 = arith.muli %arg1, %c128_i32 : i32
    %c1_i32_27 = arith.constant 1 : i32
    %67 = arith.subi %66, %c1_i32_27 : i32
    %68 = tpu.iota {dimensions = array<i32: 1>} : vector<1x130xi32>
    %69 = vector.broadcast %67 : i32 to vector<1x130xi32>
    %70 = arith.addi %69, %68 : vector<1x130xi32>
    %c0_i32_28 = arith.constant 0 : i32
    %71 = vector.broadcast %c0_i32_28 : i32 to vector<1x130xi32>
    %72 = arith.cmpi sge, %70, %71 : vector<1x130xi32>
    %c8_i32 = arith.constant 8 : i32
    %73 = vector.broadcast %c8_i32 : i32 to vector<1x130xi32>
    %74 = arith.cmpi slt, %70, %73 : vector<1x130xi32>
    %75 = arith.andi %72, %74 : vector<1x130xi1>
    %cst_29 = arith.constant 0.000000e+00 : f32
    %76 = vector.shape_cast %75 : vector<1x130xi1> to vector<1x130xi1>
    %77 = vector.broadcast %76 : vector<1x130xi1> to vector<8x130xi1>
    %78 = vector.broadcast %cst_29 : f32 to vector<8x130xf32>
    %79 = arith.select %77, %65, %78 : vector<8x130xi1>, vector<8x130xf32>
    %80 = vector.extract_strided_slice %9 {offsets = [0, 1], sizes = [8, 128], strides = [1, 1]} : vector<8x256xf32> to vector<8x128xf32>
    %81 = vector.extract_strided_slice %34 {offsets = [0, 1], sizes = [8, 128], strides = [1, 1]} : vector<8x256xf32> to vector<8x128xf32>
    %82 = arith.maximumf %80, %81 : vector<8x128xf32>
    %83 = vector.extract_strided_slice %79 {offsets = [0, 0], sizes = [8, 128], strides = [1, 1]} : vector<8x130xf32> to vector<8x128xf32>
    %84 = vector.extract_strided_slice %79 {offsets = [0, 1], sizes = [8, 128], strides = [1, 1]} : vector<8x130xf32> to vector<8x128xf32>
    %85 = vector.extract_strided_slice %79 {offsets = [0, 2], sizes = [8, 128], strides = [1, 1]} : vector<8x130xf32> to vector<8x128xf32>
    %86 = tpu.concatenate %83, %84, %85, %82 in 0 : vector<8x128xf32>, vector<8x128xf32>, vector<8x128xf32>, vector<8x128xf32> -> vector<32x128xf32>
    %c0_30 = arith.constant 0 : index
    %c0_31 = arith.constant 0 : index
    %87 = vector.load %arg8[%c0_30, %c0_31] : memref<8x32xf32, #tpu.memory_space<vmem>>, vector<8x32xf32>
    %cst_32 = arith.constant dense<0.000000e+00> : vector<8x128xf32>
    %88 = tpu.matmul %87, %86, %cst_32 {dimension_numbers = #tpu.dot_dimension_numbers<[1], [0], [0], [1], [0, 0, 1, 1], [], []>} : vector<8x32xf32>, vector<32x128xf32>, vector<8x128xf32> -> vector<8x128xf32>
    %c0_33 = arith.constant 0 : index
    %c0_34 = arith.constant 0 : index
    %89 = vector.load %arg9[%c0_33, %c0_34] : memref<8x1xf32, #tpu.memory_space<vmem>>, vector<8x1xf32>
    %90 = vector.broadcast %89 : vector<8x1xf32> to vector<8x128xf32>
    %91 = arith.addf %88, %90 : vector<8x128xf32>
    %c0_35 = arith.constant 0 : index
    %c0_36 = arith.constant 0 : index
    %c0_37 = arith.constant 0 : index
    %92 = vector.load %arg10[%c0_35, %c0_36, %c0_37] : memref<1x8x128xf32, #tpu.memory_space<vmem>>, vector<1x8x128xf32>
    %93 = vector.shape_cast %92 : vector<1x8x128xf32> to vector<8x128xf32>
    %94 = vector.shape_cast %91 : vector<8x128xf32> to vector<1x8x128xf32>
    tpu.vector_store %arg10[%c0_35, %c0_36, %c0_37], %94 {strides = array<i32>} : memref<1x8x128xf32, #tpu.memory_space<vmem>>, vector<1x8x128xf32>,
    return
  }
  func.func @transform_0(%arg0: i32, %arg1: i32) -> (i32, i32, i32) {
    %c0_i32 = arith.constant 0 : i32
    %c0_i32_0 = arith.constant 0 : i32
    return %arg0, %c0_i32, %arg1 : i32, i32, i32
  }
  func.func @transform_1(%arg0: i32, %arg1: i32) -> (i32, i32, i32) {
    %c1_i32 = arith.constant 1 : i32
    %0 = arith.addi %arg1, %c1_i32 : i32
    %c1_i32_0 = arith.constant 1 : i32
    %1 = arith.muli %0, %c1_i32_0 : i32
    %c0_i32 = arith.constant 0 : i32
    %c0_i32_1 = arith.constant 0 : i32
    return %arg0, %c0_i32, %1 : i32, i32, i32
  }
  func.func @transform_2(%arg0: i32, %arg1: i32) -> (i32, i32) {
    %c0_i32 = arith.constant 0 : i32
    %c0_i32_0 = arith.constant 0 : i32
    %c0_i32_1 = arith.constant 0 : i32
    return %c0_i32, %c0_i32_0 : i32, i32
  }
  func.func @transform_3(%arg0: i32, %arg1: i32) -> (i32, i32) {
    %c0_i32 = arith.constant 0 : i32
    %c0_i32_0 = arith.constant 0 : i32
    %c0_i32_1 = arith.constant 0 : i32
    return %c0_i32, %c0_i32_0 : i32, i32
  }
  func.func @transform_4(%arg0: i32, %arg1: i32) -> (i32, i32) {
    %c0_i32 = arith.constant 0 : i32
    %c0_i32_0 = arith.constant 0 : i32
    %c0_i32_1 = arith.constant 0 : i32
    return %c0_i32, %c0_i32_0 : i32, i32
  }
  func.func @transform_5(%arg0: i32, %arg1: i32) -> (i32, i32) {
    %c0_i32 = arith.constant 0 : i32
    %c0_i32_0 = arith.constant 0 : i32
    %c0_i32_1 = arith.constant 0 : i32
    return %c0_i32, %c0_i32_0 : i32, i32
  }
  func.func @transform_6(%arg0: i32, %arg1: i32) -> (i32, i32) {
    %c0_i32 = arith.constant 0 : i32
    %c0_i32_0 = arith.constant 0 : i32
    %c0_i32_1 = arith.constant 0 : i32
    return %c0_i32, %c0_i32_0 : i32, i32
  }
  func.func @transform_7(%arg0: i32, %arg1: i32) -> (i32, i32) {
    %c0_i32 = arith.constant 0 : i32
    %c0_i32_0 = arith.constant 0 : i32
    %c0_i32_1 = arith.constant 0 : i32
    return %c0_i32, %c0_i32_0 : i32, i32
  }
  func.func @transform_8(%arg0: i32, %arg1: i32) -> (i32, i32, i32) {
    %c0_i32 = arith.constant 0 : i32
    %c0_i32_0 = arith.constant 0 : i32
    return %arg0, %c0_i32, %arg1 : i32, i32, i32
  }
}

</mosaic_0001>

<llo_original>
// kernel: tpu_custom_call.1
$region0: #{tpu_custom_call.1}
  #allocation0 [shape = 'u32[]', space=smem, size = 0x4, offset = 0x4, fixed_abs, tag = 'smem constant byte address 0x4 - core index']
  #allocation1 [shape = 'u32[144,128]{1,0:T(1,128)}', space=vmem, size = 0x12000, scoped, tag = 'internal scratch']
  %s0 = inlined_call_operand.hbm [shape: f32[2,16,256], index: 0, kind: input, shape index: {}]
  %s1 = inlined_call_operand.hbm [shape: f32[2,16,256], index: 1, kind: input, shape index: {}]
  %s2 = inlined_call_operand.vmem [shape: f32[8,1], index: 2, kind: input, shape index: {}]
  %s3 = inlined_call_operand.vmem [shape: f32[8,1], index: 3, kind: input, shape index: {}]
  %s4 = inlined_call_operand.vmem [shape: f32[8,24], index: 4, kind: input, shape index: {}]
  %s5 = inlined_call_operand.vmem [shape: f32[8,1], index: 5, kind: input, shape index: {}]
  %s6 = inlined_call_operand.vmem [shape: f32[8,32], index: 6, kind: input, shape index: {}]
  %s7 = inlined_call_operand.vmem [shape: f32[8,1], index: 7, kind: input, shape index: {}]
  %s8 = inlined_call_operand.hbm [shape: f32[2,8,128], index: 8, kind: output, shape index: {}]
  %s9 = sld [smem:[#allocation0]]
  $region73: #{tpu_custom_call.1} parent=0
    _
  %s11 = ssub.s32 1, %s9
  %s12 = scalar_select 0, %s11, %s9
  $region1: #{tpu_custom_call.1} parent=0
    #allocation2 [shape = 'u8[16384]{0}', space=vmem, size = 0x4000, scoped, tag = 'input window, operand 0']
    #allocation3 [shape = 's32[2]{0}', space=sflag, size = 0x8, scoped, tag = 'scoped memory for tpu_custom_call.1']
    #allocation4 [shape = 's32[2]{0}', space=sflag, size = 0x8, scoped, tag = 'scoped memory for tpu_custom_call.1']
    #allocation5 [shape = 'u8[16384]{0}', space=vmem, size = 0x4000, scoped, tag = 'input window, operand 1']
    #allocation6 [shape = 's32[2]{0}', space=sflag, size = 0x8, scoped, tag = 'scoped memory for tpu_custom_call.1']
    #allocation7 [shape = 'u8[8192]{0}', space=vmem, size = 0x2000, scoped, tag = 'output window, operand 0']
    %13 = vsyncpa [#allocation3], 0
    %s14 = scalar_lea.sflag [#allocation3], 1
    %15 = vsyncpa %s14, 0
    %16 = vsyncpa [#allocation6], 0
    %s17 = scalar_lea.sflag [#allocation6], 1
    %18 = vsyncpa %s17, 0
    %19 = vsyncpa [#allocation4], 0
    %s20 = scalar_lea.sflag [#allocation4], 1
    %21 = vsyncpa %s20, 0
    loop: start=0, step=1, limit=4
    $region2: #{tpu_custom_call.1} parent=1 // loop_pre_header
      _
    $region3: #{tpu_custom_call.1} parent=1 // loop_header
      %s23 = sphi 0, %s27
      %p24 = scmp.ge.s32.totalorder %s23, 4
      %s30 = sphi 0, %s42
      %s31 = sphi 0, %s38
      %s32 = sphi 0, %s30
      %s33 = sphi 0, %s31
      %s34 = sphi 0, %s32
      %s35 = sphi 0, %s33
      %s47 = sphi 0, %s49
      %s50 = sphi 0, %s47
      %s51 = sphi 0, %s50
      %s67 = sphi 0, %s51
      %s77 = sphi 0, %s79
      %s80 = sphi 0, %s77
      %s81 = sphi 0, %s80
      %s97 = sphi 0, %s81
      %s101 = sphi 0, %s101
      %s103 = sphi 0, %s101
      %s104 = sphi 0, %s103
      %s118 = sphi 0, %s104
      %s122 = sphi 0, %s122
      %s124 = sphi 0, %s122
      %s125 = sphi 0, %s124
      %s139 = sphi 0, %s125
      %s143 = sphi 0, %s143
      %s145 = sphi 0, %s143
      %s146 = sphi 0, %s145
      %s160 = sphi 0, %s146
      %s164 = sphi 0, %s164
      %s166 = sphi 0, %s164
      %s167 = sphi 0, %s166
      %s181 = sphi 0, %s167
      %s185 = sphi 0, %s185
      %s187 = sphi 0, %s185
      %s188 = sphi 0, %s187
      %s202 = sphi 0, %s188
      %s206 = sphi 0, %s206
      %s208 = sphi 0, %s206
      %s209 = sphi 0, %s208
      %s223 = sphi 0, %s209
      %s231 = sphi 0, %s233
      %s234 = sphi 0, %s231
      %s235 = sphi 0, %s234
      %s251 = sphi 0, %s235
    $region4: #{tpu_custom_call.1} parent=1 // loop_header_branch
      %26 = sbr.rel (%p24) target = $region8
    $region5: #{tpu_custom_call.1} parent=1 // loop_body
      %s28 = ssub.s32 %s23, 1
      %s29 = ssub.s32 %s23, 2
      %s36 = sadd.s32 1, %s31
      %p37 = scmp.ge.s32.totalorder %s36, 1
      %s38 = scalar_select %p37, 0, %s36
      %s39 = sadd.s32 1, %s30
      %s40 = scalar_select %p37, %s39, %s30
      %p41 = scmp.ge.s32.totalorder %s40, 2
      %s42 = scalar_select %p41, 0, %s40
      %s43 = ssub.s32 %s30, %s42
      %s44 = ssub.s32 %s31, %s38
      %s45 = sor.u32 %s43, %s44
      %p46 = scmp.eq.s32.totalorder %s45, 0
      %s48 = sadd.s32 %s47, 1
      %s49 = scalar_select %p46, %s47, %s48
      %p52 = pneg %p46
      %p53 = scmp.eq.s32.totalorder %s23, 1
      %p54 = por %p52, %p53
      %p55 = scmp.ne.s32.totalorder %s47, %s50
      %p56 = scmp.eq.s32.totalorder %s23, 0
      %p57 = por %p55, %p56
      %p58 = scmp.ne.s32.totalorder %s47, %s50
      %p59 = scmp.eq.s32.totalorder %s28, 1
      %p60 = por %p58, %p59
      %p61 = scmp.ne.s32.totalorder %s50, %s51
      %p62 = scmp.eq.s32.totalorder %s28, 0
      %p63 = por %p61, %p62
      %p64 = scmp.ne.s32.totalorder %s50, %s51
      %p65 = scmp.eq.s32.totalorder %s29, 1
      %p66 = por %p64, %p65
      %p68 = scmp.ne.s32.totalorder %s51, %s67
      %p69 = scmp.eq.s32.totalorder %s29, 0
      %p70 = por %p68, %p69
      %s71 = sadd.s32 %s31, 1
      %s72 = sadd.s32 %s38, 1
      %s73 = ssub.s32 %s30, %s42
      %s74 = ssub.s32 %s71, %s72
      %s75 = sor.u32 %s73, %s74
      %p76 = scmp.eq.s32.totalorder %s75, 0
      %s78 = sadd.s32 %s77, 1
      %s79 = scalar_select %p76, %s77, %s78
      %p82 = pneg %p76
      %p83 = scmp.eq.s32.totalorder %s23, 1
      %p84 = por %p82, %p83
      %p85 = scmp.ne.s32.totalorder %s77, %s80
      %p86 = scmp.eq.s32.totalorder %s23, 0
      %p87 = por %p85, %p86
      %p88 = scmp.ne.s32.totalorder %s77, %s80
      %p89 = scmp.eq.s32.totalorder %s28, 1
      %p90 = por %p88, %p89
      %p91 = scmp.ne.s32.totalorder %s80, %s81
      %p92 = scmp.eq.s32.totalorder %s28, 0
      %p93 = por %p91, %p92
      %p94 = scmp.ne.s32.totalorder %s80, %s81
      %p95 = scmp.eq.s32.totalorder %s29, 1
      %p96 = por %p94, %p95
      %p98 = scmp.ne.s32.totalorder %s81, %s97
      %p99 = scmp.eq.s32.totalorder %s29, 0
      %p100 = por %p98, %p99
      %s102 = sadd.s32 %s101, 1
      %p105 = scmp.eq.s32.totalorder %s23, 1
      %p106 = scmp.ne.s32.totalorder %s101, %s103
      %p107 = scmp.eq.s32.totalorder %s23, 0
      %p108 = por %p106, %p107
      %p109 = scmp.ne.s32.totalorder %s101, %s103
      %p110 = scmp.eq.s32.totalorder %s28, 1
      %p111 = por %p109, %p110
      %p112 = scmp.ne.s32.totalorder %s103, %s104
      %p113 = scmp.eq.s32.totalorder %s28, 0
      %p114 = por %p112, %p113
      %p115 = scmp.ne.s32.totalorder %s103, %s104
      %p116 = scmp.eq.s32.totalorder %s29, 1
      %p117 = por %p115, %p116
      %p119 = scmp.ne.s32.totalorder %s104, %s118
      %p120 = scmp.eq.s32.totalorder %s29, 0
      %p121 = por %p119, %p120
      %s123 = sadd.s32 %s122, 1
      %p126 = scmp.eq.s32.totalorder %s23, 1
      %p127 = scmp.ne.s32.totalorder %s122, %s124
      %p128 = scmp.eq.s32.totalorder %s23, 0
      %p129 = por %p127, %p128
      %p130 = scmp.ne.s32.totalorder %s122, %s124
      %p131 = scmp.eq.s32.totalorder %s28, 1
      %p132 = por %p130, %p131
      %p133 = scmp.ne.s32.totalorder %s124, %s125
      %p134 = scmp.eq.s32.totalorder %s28, 0
      %p135 = por %p133, %p134
      %p136 = scmp.ne.s32.totalorder %s124, %s125
      %p137 = scmp.eq.s32.totalorder %s29, 1
      %p138 = por %p136, %p137
      %p140 = scmp.ne.s32.totalorder %s125, %s139
      %p141 = scmp.eq.s32.totalorder %s29, 0
      %p142 = por %p140, %p141
      %s144 = sadd.s32 %s143, 1
      %p147 = scmp.eq.s32.totalorder %s23, 1
      %p148 = scmp.ne.s32.totalorder %s143, %s145
      %p149 = scmp.eq.s32.totalorder %s23, 0
      %p150 = por %p148, %p149
      %p151 = scmp.ne.s32.totalorder %s143, %s145
      %p152 = scmp.eq.s32.totalorder %s28, 1
      %p153 = por %p151, %p152
      %p154 = scmp.ne.s32.totalorder %s145, %s146
      %p155 = scmp.eq.s32.totalorder %s28, 0
      %p156 = por %p154, %p155
      %p157 = scmp.ne.s32.totalorder %s145, %s146
      %p158 = scmp.eq.s32.totalorder %s29, 1
      %p159 = por %p157, %p158
      %p161 = scmp.ne.s32.totalorder %s146, %s160
      %p162 = scmp.eq.s32.totalorder %s29, 0
      %p163 = por %p161, %p162
      %s165 = sadd.s32 %s164, 1
      %p168 = scmp.eq.s32.totalorder %s23, 1
      %p169 = scmp.ne.s32.totalorder %s164, %s166
      %p170 = scmp.eq.s32.totalorder %s23, 0
      %p171 = por %p169, %p170
      %p172 = scmp.ne.s32.totalorder %s164, %s166
      %p173 = scmp.eq.s32.totalorder %s28, 1
      %p174 = por %p172, %p173
      %p175 = scmp.ne.s32.totalorder %s166, %s167
      %p176 = scmp.eq.s32.totalorder %s28, 0
      %p177 = por %p175, %p176
      %p178 = scmp.ne.s32.totalorder %s166, %s167
      %p179 = scmp.eq.s32.totalorder %s29, 1
      %p180 = por %p178, %p179
      %p182 = scmp.ne.s32.totalorder %s167, %s181
      %p183 = scmp.eq.s32.totalorder %s29, 0
      %p184 = por %p182, %p183
      %s186 = sadd.s32 %s185, 1
      %p189 = scmp.eq.s32.totalorder %s23, 1
      %p190 = scmp.ne.s32.totalorder %s185, %s187
      %p191 = scmp.eq.s32.totalorder %s23, 0
      %p192 = por %p190, %p191
      %p193 = scmp.ne.s32.totalorder %s185, %s187
      %p194 = scmp.eq.s32.totalorder %s28, 1
      %p195 = por %p193, %p194
      %p196 = scmp.ne.s32.totalorder %s187, %s188
      %p197 = scmp.eq.s32.totalorder %s28, 0
      %p198 = por %p196, %p197
      %p199 = scmp.ne.s32.totalorder %s187, %s188
      %p200 = scmp.eq.s32.totalorder %s29, 1
      %p201 = por %p199, %p200
      %p203 = scmp.ne.s32.totalorder %s188, %s202
      %p204 = scmp.eq.s32.totalorder %s29, 0
      %p205 = por %p203, %p204
      %s207 = sadd.s32 %s206, 1
      %p210 = scmp.eq.s32.totalorder %s23, 1
      %p211 = scmp.ne.s32.totalorder %s206, %s208
      %p212 = scmp.eq.s32.totalorder %s23, 0
      %p213 = por %p211, %p212
      %p214 = scmp.ne.s32.totalorder %s206, %s208
      %p215 = scmp.eq.s32.totalorder %s28, 1
      %p216 = por %p214, %p215
      %p217 = scmp.ne.s32.totalorder %s208, %s209
      %p218 = scmp.eq.s32.totalorder %s28, 0
      %p219 = por %p217, %p218
      %p220 = scmp.ne.s32.totalorder %s208, %s209
      %p221 = scmp.eq.s32.totalorder %s29, 1
      %p222 = por %p220, %p221
      %p224 = scmp.ne.s32.totalorder %s209, %s223
      %p225 = scmp.eq.s32.totalorder %s29, 0
      %p226 = por %p224, %p225
      %s227 = ssub.s32 %s30, %s42
      %s228 = ssub.s32 %s31, %s38
      %s229 = sor.u32 %s227, %s228
      %p230 = scmp.eq.s32.totalorder %s229, 0
      %s232 = sadd.s32 %s231, 1
      %s233 = scalar_select %p230, %s231, %s232
      %p236 = pneg %p230
      %p237 = scmp.eq.s32.totalorder %s23, 1
      %p238 = por %p236, %p237
      %p239 = scmp.ne.s32.totalorder %s231, %s234
      %p240 = scmp.eq.s32.totalorder %s23, 0
      %p241 = por %p239, %p240
      %p242 = scmp.ne.s32.totalorder %s231, %s234
      %p243 = scmp.eq.s32.totalorder %s28, 1
      %p244 = por %p242, %p243
      %p245 = scmp.ne.s32.totalorder %s234, %s235
      %p246 = scmp.eq.s32.totalorder %s28, 0
      %p247 = por %p245, %p246
      %p248 = scmp.ne.s32.totalorder %s234, %s235
      %p249 = scmp.eq.s32.totalorder %s29, 1
      %p250 = por %p248, %p249
      %p252 = scmp.ne.s32.totalorder %s235, %s251
      %p253 = scmp.eq.s32.totalorder %s29, 0
      %p254 = por %p252, %p253
      %p255 = scmp.le.s32.totalorder 1, %s23
      %p256 = scmp.lt.s32.totalorder %s23, 3
      %p257 = pnand %p255, %p256
      %p258 = pneg %p257
      // Predicated region
      $region9: #{tpu_custom_call.1} parent=5 // pred_check
        _
      $region10: #{tpu_custom_call.1} parent=5 // pred_check_branch
        %260 = sbr.rel (%p257) target = $region12
      $region11: #{tpu_custom_call.1} parent=5 // pred_region
        %s261 = ssub.s32 %s23, 1
        // Predicated region
        $region13: #{tpu_custom_call.1} parent=11 // pred_check
          %p262 = pneg %p114
        $region14: #{tpu_custom_call.1} parent=11 // pred_check_branch
          %264 = sbr.rel (%p262) target = $region16
        $region15: #{tpu_custom_call.1} parent=11 // pred_region
          _
        $region16: #{tpu_custom_call.1} parent=11 // pred_fallthru
          _
        // Predicated region
        $region17: #{tpu_custom_call.1} parent=11 // pred_check
          %p265 = pneg %p135
        $region18: #{tpu_custom_call.1} parent=11 // pred_check_branch
          %267 = sbr.rel (%p265) target = $region20
        $region19: #{tpu_custom_call.1} parent=11 // pred_region
          _
        $region20: #{tpu_custom_call.1} parent=11 // pred_fallthru
          _
        // Predicated region
        $region21: #{tpu_custom_call.1} parent=11 // pred_check
          %p268 = pneg %p156
        $region22: #{tpu_custom_call.1} parent=11 // pred_check_branch
          %270 = sbr.rel (%p268) target = $region24
        $region23: #{tpu_custom_call.1} parent=11 // pred_region
          _
        $region24: #{tpu_custom_call.1} parent=11 // pred_fallthru
          _
        // Predicated region
        $region25: #{tpu_custom_call.1} parent=11 // pred_check
          %p271 = pneg %p177
        $region26: #{tpu_custom_call.1} parent=11 // pred_check_branch
          %273 = sbr.rel (%p271) target = $region28
        $region27: #{tpu_custom_call.1} parent=11 // pred_region
          _
        $region28: #{tpu_custom_call.1} parent=11 // pred_fallthru
          _
        // Predicated region
        $region29: #{tpu_custom_call.1} parent=11 // pred_check
          %p274 = pneg %p198
        $region30: #{tpu_custom_call.1} parent=11 // pred_check_branch
          %276 = sbr.rel (%p274) target = $region32
        $region31: #{tpu_custom_call.1} parent=11 // pred_region
          _
        $region32: #{tpu_custom_call.1} parent=11 // pred_fallthru
          _
        // Predicated region
        $region33: #{tpu_custom_call.1} parent=11 // pred_check
          %p277 = pneg %p219
        $region34: #{tpu_custom_call.1} parent=11 // pred_check_branch
          %279 = sbr.rel (%p277) target = $region36
        $region35: #{tpu_custom_call.1} parent=11 // pred_region
          _
        $region36: #{tpu_custom_call.1} parent=11 // pred_fallthru
          _
      $region12: #{tpu_custom_call.1} parent=5 // pred_fallthru
        _
      %p280 = scmp.lt.s32.totalorder %s23, 2
      // Predicated region
      $region37: #{tpu_custom_call.1} parent=5 // pred_check
        %p281 = pneg %p280
      $region38: #{tpu_custom_call.1} parent=5 // pred_check_branch
        %283 = sbr.rel (%p281) target = $region40
      $region39: #{tpu_custom_call.1} parent=5 // pred_region
        // Predicated region
        $region41: #{tpu_custom_call.1} parent=39 // pred_check
          %p284 = pneg %p57
        $region42: #{tpu_custom_call.1} parent=39 // pred_check_branch
          %286 = sbr.rel (%p284) target = $region44
        $region43: #{tpu_custom_call.1} parent=39 // pred_region
          %s287 = sand.u32 %s47, 1
          %s288 = scalar_lea.sflag [#allocation3], %s287
          %s289 = sand.u32 %s47, 1
          %s290 = smul.addr %s289, 16
          %s291 = scalar_lea.vmem [#allocation2], %s290
          %s293 = ssub.s32 256, 256
          %294 = vsyncadd %s288, %s293
          %s295 = smul.addr %s30, 4
          %s296 = sadd.s32 %s31, %s295
          %s297 = smul.addr %s296, 128
          %s298 = scalar_lea.hbm %s0, %s297
          %s299 = sshll.u32 %s291, 4
          %s300 = int_to_ptr.vmem [resolvable:$true] %s299
          %305 = dma.hbm_to_vmem [thread:$0]  %s298, 256, %s300, %s288, 256, 128, 8
        $region44: #{tpu_custom_call.1} parent=39 // pred_fallthru
          _
        // Predicated region
        $region45: #{tpu_custom_call.1} parent=39 // pred_check
          %p306 = pneg %p87
        $region46: #{tpu_custom_call.1} parent=39 // pred_check_branch
          %308 = sbr.rel (%p306) target = $region48
        $region47: #{tpu_custom_call.1} parent=39 // pred_region
          %s309 = sand.u32 %s77, 1
          %s310 = scalar_lea.sflag [#allocation6], %s309
          %s311 = sand.u32 %s77, 1
          %s312 = smul.addr %s311, 16
          %s313 = scalar_lea.vmem [#allocation5], %s312
          %s314 = sadd.s32 %s31, 1
          %s316 = ssub.s32 256, 256
          %317 = vsyncadd %s310, %s316
          %s318 = smul.addr %s30, 4
          %s319 = sadd.s32 %s314, %s318
          %s320 = smul.addr %s319, 128
          %s321 = scalar_lea.hbm %s1, %s320
          %s322 = sshll.u32 %s313, 4
          %s323 = int_to_ptr.vmem [resolvable:$true] %s322
          %328 = dma.hbm_to_vmem [thread:$0]  %s321, 256, %s323, %s310, 256, 128, 8
        $region48: #{tpu_custom_call.1} parent=39 // pred_fallthru
          _
      $region40: #{tpu_custom_call.1} parent=5 // pred_fallthru
        _
      %p329 = scmp.le.s32.totalorder 1, %s23
      %p330 = scmp.lt.s32.totalorder %s23, 3
      %p331 = pnand %p329, %p330
      %p332 = pneg %p331
      // Predicated region
      $region49: #{tpu_custom_call.1} parent=5 // pred_check
        _
      $region50: #{tpu_custom_call.1} parent=5 // pred_check_branch
        %334 = sbr.rel (%p331) target = $region52
      $region51: #{tpu_custom_call.1} parent=5 // pred_region
        %s335 = ssub.s32 %s23, 1
        %s336 = sand.u32 %s50, 1
        %s337 = scalar_lea.sflag [#allocation3], %s336
        %s338 = sand.u32 %s50, 1
        %s339 = smul.addr %s338, 16
        %s340 = scalar_lea.vmem [#allocation2], %s339
        // Predicated region
        $region53: #{tpu_custom_call.1} parent=51 // pred_check
          %p341 = pneg %p63
        $region54: #{tpu_custom_call.1} parent=51 // pred_check_branch
          %343 = sbr.rel (%p341) target = $region56
        $region55: #{tpu_custom_call.1} parent=51 // pred_region
          %344 = dma.done %s337, 256
        $region56: #{tpu_custom_call.1} parent=51 // pred_fallthru
          _
        %s345 = sand.u32 %s80, 1
        %s346 = scalar_lea.sflag [#allocation6], %s345
        %s347 = sand.u32 %s80, 1
        %s348 = smul.addr %s347, 16
        %s349 = scalar_lea.vmem [#allocation5], %s348
        // Predicated region
        $region57: #{tpu_custom_call.1} parent=51 // pred_check
          %p350 = pneg %p93
        $region58: #{tpu_custom_call.1} parent=51 // pred_check_branch
          %352 = sbr.rel (%p350) target = $region60
        $region59: #{tpu_custom_call.1} parent=51 // pred_region
          %353 = dma.done %s346, 256
        $region60: #{tpu_custom_call.1} parent=51 // pred_fallthru
          _
        %s354 = sand.u32 %s50, 1
        %s355 = scalar_lea.sflag [#allocation3], %s354
        %s356 = sand.u32 %s50, 1
        %s357 = smul.addr %s356, 16
        %s358 = scalar_lea.vmem [#allocation2], %s357
        %p359 = pneg %p63
        %p360 = pneg %p60
        %s361 = sand.u32 %s80, 1
        %s362 = scalar_lea.sflag [#allocation6], %s361
        %s363 = sand.u32 %s80, 1
        %s364 = smul.addr %s363, 16
        %s365 = scalar_lea.vmem [#allocation5], %s364
        %p366 = pneg %p93
        %p367 = pneg %p90
        %p368 = pneg %p114
        %p369 = pneg %p111
        %p370 = pneg %p135
        %p371 = pneg %p132
        %p372 = pneg %p156
        %p373 = pneg %p153
        %p374 = pneg %p177
        %p375 = pneg %p174
        %p376 = pneg %p198
        %p377 = pneg %p195
        %p378 = pneg %p219
        %p379 = pneg %p216
        %p380 = pneg %p247
        %p381 = pneg %p244
        %s382 = sand.u32 %s234, 1
        %s383 = scalar_lea.sflag [#allocation4], %s382
        %s384 = sand.u32 %s234, 1
        %s385 = smul.addr %s384, 8
        %s386 = scalar_lea.vmem [#allocation7], %s385
        %s387 = sadd.s32 %s33, 1
        %s388 = smul.u32 %s33, 256
        %s389 = sadd.s32 %s388, 4294967294
        %v390 = vlaneseq
        %v391 = vand.u32 %v390, 127
        %v392 = vadd.s32 %v391, 128
        %v393 = vld [vmem:[%s2] sm:$0xff]
        %v394 = vld [vmem:[%s3] sm:$0xff]
        %v395 = vld [vmem:[%s340] sm:$0xff]
        %v396 = vld [vmem:[%s349] sm:$0xff]
        %398 = vset.pattern.permute.xlu0 0
        %399 = vperm.xlu0 %398, %v393
        %v400 = vpop.permute.xlu0 %399
        %v402 = vmul.f32 %v395, %v400
        %v403 = vmul.f32 %v396, %v400
        %405 = vset.pattern.permute.xlu0 0
        %406 = vperm.xlu0 %405, %v394
        %v407 = vpop.permute.xlu0 %406
        %v409 = vadd.f32 %v402, %v407
        %v410 = vadd.f32 %v403, %v407
        %v411 = vmax.f32 %v409, 0.0
        %v412 = vmax.f32 %v410, 0.0
        %v413 = vmul.u32 %v391, 2
        %v414 = vmul.u32 %v392, 2
        %v415 = vstv %s389
        %v416 = vadd.s32 %v415, %v413
        %v417 = vadd.s32 %v415, %v414
        %vm418 = vcmp.ge.s32.totalorder %v416, 0
        %vm419 = vcmp.ge.s32.totalorder %v417, 0
        %vm420 = vcmp.lt.s32.totalorder %v416, 16
        %vm421 = vcmp.lt.s32.totalorder %v417, 16
        %vm422 = vmand %vm418, %vm420
        %vm423 = vmand %vm419, %vm421
        %v424 = vsel %vm422, 1, 0
        %v425 = vsel %vm423, 1, 0
        %vm426 = vcmp.eq.s32.totalorder %v424, 1
        %vm427 = vcmp.eq.s32.totalorder %v425, 1
        %v428 = vsel %vm426, %v411, 0.0
        %v429 = vsel %vm427, %v412, 0.0
        %v430 = vld [vmem:[%s340 + $0x8] sm:$0xff]
        %v431 = vld [vmem:[%s349 + $0x8] sm:$0xff]
        %v432 = vmul.f32 %v430, %v400
        %v433 = vmul.f32 %v431, %v400
        %v434 = vadd.f32 %v432, %v407
        %v435 = vadd.f32 %v433, %v407
        %v436 = vmax.f32 %v434, 0.0
        %v437 = vmax.f32 %v435, 0.0
        %s438 = sadd.s32 %s388, 4294967295
        %v439 = vstv %s438
        %v440 = vadd.s32 %v439, %v413
        %v441 = vadd.s32 %v439, %v414
        %vm442 = vcmp.ge.s32.totalorder %v440, 0
        %vm443 = vcmp.ge.s32.totalorder %v441, 0
        %vm444 = vcmp.lt.s32.totalorder %v440, 16
        %vm445 = vcmp.lt.s32.totalorder %v441, 16
        %vm446 = vmand %vm442, %vm444
        %vm447 = vmand %vm443, %vm445
        %v448 = vsel %vm446, 1, 0
        %v449 = vsel %vm447, 1, 0
        %vm450 = vcmp.eq.s32.totalorder %v448, 1
        %vm451 = vcmp.eq.s32.totalorder %v449, 1
        %v452 = vsel %vm450, %v436, 0.0
        %v453 = vsel %vm451, %v437, 0.0
        %456 = vrot.lane.b32.xlu0 %v428, 127
        %v457 = vpop.permute.xlu0 %456
        %458 = vrot.lane.b32.xlu0 %v429, 127
        %v459 = vpop.permute.xlu0 %458
        %vm460 = vcmask 1039360
        %v461 = vsel %vm460, %v457, %v459
        %v464 = vld [vmem:[%s4] sm:$0xff]
        %v465 = vld [vmem:[%s5] sm:$0xff]
        %467 = vset.pattern.permute.xlu0 0
        %468 = vperm.xlu0 %467, %v465
        %v469 = vpop.permute.xlu0 %468
        %vm471 = vcmask 195584
        %v473 = vsel %vm471, %v464, 0
        %475 = vmatprep.subr.mxu0 0.0
        %476 = vmatpush1.msra.mxu0 0.0
        %477 = vmatprep.subr.mxu0 0.0
        %478 = vmatpush1.msra.mxu0 0.0
        %479 = vmatprep.subr.mxu0 0.0
        %480 = vmatpush1.msra.mxu0 0.0
        %481 = vmatprep.subr.mxu0 0.0
        %482 = vmatpush1.msra.mxu0 0.0
        %483 = vmatprep.subr.mxu0 0.0
        %484 = vmatpush1.msra.mxu0 0.0
        %485 = vmatprep.subr.mxu0 0.0
        %486 = vmatpush1.msra.mxu0 0.0
        %487 = vmatprep.subr.mxu0 0.0
        %488 = vmatpush1.msra.mxu0 0.0
        %489 = vmatprep.subr.mxu0 0.0
        %490 = vmatpush1.msra.mxu0 0.0
        %491 = vmatprep.subr.mxu0 0.0
        %492 = vmatpush1.msra.mxu0 0.0
        %493 = vmatprep.subr.mxu0 0.0
        %494 = vmatpush1.msra.mxu0 0.0
        %495 = vmatprep.subr.mxu0 0.0
        %496 = vmatpush1.msra.mxu0 0.0
        %497 = vmatprep.subr.mxu0 0.0
        %498 = vmatpush1.msra.mxu0 0.0
        %499 = vmatprep.subr.mxu0 0.0
        %500 = vmatpush1.msra.mxu0 0.0
        %501 = vmatprep.subr.mxu0 %v459
        %502 = vmatpush1.msra.mxu0 %v461
        %503 = vmatprep.subr.mxu0 %v453
        %504 = vmatpush1.msra.mxu0 %v452
        %505 = vmatprep.subr.mxu0 %v429
        %506 = vmatpush1.msra.mxu0 %v428
        %507 = vmatprep.subr.mxu0 0.0
        %508 = vmatpush2.msra.mxu0 0.0
        %509 = vmatprep.subr.mxu0 0.0
        %510 = vmatpush2.msra.mxu0 0.0
        %511 = vmatprep.subr.mxu0 0.0
        %512 = vmatpush2.msra.mxu0 0.0
        %513 = vmatprep.subr.mxu0 0.0
        %514 = vmatpush2.msra.mxu0 0.0
        %515 = vmatprep.subr.mxu0 0.0
        %516 = vmatpush2.msra.mxu0 0.0
        %517 = vmatprep.subr.mxu0 0.0
        %518 = vmatpush2.msra.mxu0 0.0
        %519 = vmatprep.subr.mxu0 0.0
        %520 = vmatpush2.msra.mxu0 0.0
        %521 = vmatprep.subr.mxu0 0.0
        %522 = vmatpush2.msra.mxu0 0.0
        %523 = vmatprep.subr.mxu0 0.0
        %524 = vmatpush2.msra.mxu0 0.0
        %525 = vmatprep.subr.mxu0 0.0
        %526 = vmatpush2.msra.mxu0 0.0
        %527 = vmatprep.subr.mxu0 0.0
        %528 = vmatpush2.msra.mxu0 0.0
        %529 = vmatprep.subr.mxu0 0.0
        %530 = vmatpush2.msra.mxu0 0.0
        %531 = vmatprep.subr.mxu0 0.0
        %532 = vmatpush2.msra.mxu0 0.0
        %533 = vmatprep.subr.mxu0 0.0
        %534 = vmatpush2.msra.mxu0 0.0
        %535 = vmatprep.subr.mxu0 0.0
        %536 = vmatpush2.msra.mxu0 0.0
        %537 = vmatprep.subr.mxu0 0.0
        %538 = vmatpush2.msra.mxu0 0.0
        %539 = vmatprep.mubr.f32.mxu0 0.0
        %540 = vmatmul.mubr.f32.gmra.mxu0 %v473
        %v541 = vpop.f32.mrf.mxu0
        %v542 = vadd.f32 %v469, %v541
        %v543 = vpop.f32.mrf.mxu0
        %v544 = vadd.f32 %v469, %v543
        %545 = vdwg.mxu0
        %v546 = vmax.f32 %v542, 0.0
        %v547 = vmax.f32 %v544, 0.0
        %s548 = smul.u32 %s33, 128
        %s549 = ssub.s32 %s548, 1
        %v550 = vstv %s549
        %v551 = vadd.s32 %v550, %v391
        %v552 = vadd.s32 %v550, %v392
        %vm553 = vcmp.ge.s32.totalorder %v551, 0
        %vm554 = vcmp.ge.s32.totalorder %v552, 0
        %vm555 = vcmp.lt.s32.totalorder %v551, 8
        %vm556 = vcmp.lt.s32.totalorder %v552, 8
        %vm557 = vmand %vm553, %vm555
        %vm558 = vmand %vm554, %vm556
        %v559 = vsel %vm557, 1, 0
        %v560 = vsel %vm558, 1, 0
        %vm561 = vcmp.eq.s32.totalorder %v559, 1
        %vm562 = vcmp.eq.s32.totalorder %v560, 1
        %v563 = vsel %vm561, %v546, 0.0
        %v564 = vsel %vm562, %v547, 0.0
        %v565 = vmax.f32 %v395, %v430
        %v566 = vmax.f32 %v396, %v431
        %569 = vrot.lane.b32.xlu0 %v563, 127
        %v570 = vpop.permute.xlu0 %569
        %571 = vrot.lane.b32.xlu0 %v564, 127
        %v572 = vpop.permute.xlu0 %571
        %v573 = vsel %vm460, %v570, %v572
        %575 = vrot.lane.b32.xlu0 %v563, 126
        %v576 = vpop.permute.xlu0 %575
        %577 = vrot.lane.b32.xlu0 %v564, 126
        %v578 = vpop.permute.xlu0 %577
        %vm579 = vcmask 1031168
        %v580 = vsel %vm579, %v576, %v578
        %584 = vrot.lane.b32.xlu0 %v565, 127
        %v585 = vpop.permute.xlu0 %584
        %586 = vrot.lane.b32.xlu0 %v566, 127
        %v587 = vpop.permute.xlu0 %586
        %v588 = vsel %vm460, %v585, %v587
        %v590 = vld [vmem:[%s6] sm:$0xff]
        %v591 = vld [vmem:[%s7] sm:$0xff]
        %593 = vset.pattern.permute.xlu0 0
        %594 = vperm.xlu0 %593, %v591
        %v595 = vpop.permute.xlu0 %594
        %vm597 = vcmask 261120
        %v599 = vsel %vm597, %v590, 0
        %601 = vmatprep.subr.mxu0 0.0
        %602 = vmatpush1.msra.mxu0 0.0
        %603 = vmatprep.subr.mxu0 0.0
        %604 = vmatpush1.msra.mxu0 0.0
        %605 = vmatprep.subr.mxu0 0.0
        %606 = vmatpush1.msra.mxu0 0.0
        %607 = vmatprep.subr.mxu0 0.0
        %608 = vmatpush1.msra.mxu0 0.0
        %609 = vmatprep.subr.mxu0 0.0
        %610 = vmatpush1.msra.mxu0 0.0
        %611 = vmatprep.subr.mxu0 0.0
        %612 = vmatpush1.msra.mxu0 0.0
        %613 = vmatprep.subr.mxu0 0.0
        %614 = vmatpush1.msra.mxu0 0.0
        %615 = vmatprep.subr.mxu0 0.0
        %616 = vmatpush1.msra.mxu0 0.0
        %617 = vmatprep.subr.mxu0 0.0
        %618 = vmatpush1.msra.mxu0 0.0
        %619 = vmatprep.subr.mxu0 0.0
        %620 = vmatpush1.msra.mxu0 0.0
        %621 = vmatprep.subr.mxu0 0.0
        %622 = vmatpush1.msra.mxu0 0.0
        %623 = vmatprep.subr.mxu0 0.0
        %624 = vmatpush1.msra.mxu0 0.0
        %625 = vmatprep.subr.mxu0 0.0
        %626 = vmatpush1.msra.mxu0 %v588
        %627 = vmatprep.subr.mxu0 0.0
        %628 = vmatpush1.msra.mxu0 %v580
        %629 = vmatprep.subr.mxu0 0.0
        %630 = vmatpush1.msra.mxu0 %v573
        %631 = vmatprep.subr.mxu0 0.0
        %632 = vmatpush1.msra.mxu0 %v563
        %633 = vmatprep.subr.mxu0 0.0
        %634 = vmatpush2.msra.mxu0 0.0
        %635 = vmatprep.subr.mxu0 0.0
        %636 = vmatpush2.msra.mxu0 0.0
        %637 = vmatprep.subr.mxu0 0.0
        %638 = vmatpush2.msra.mxu0 0.0
        %639 = vmatprep.subr.mxu0 0.0
        %640 = vmatpush2.msra.mxu0 0.0
        %641 = vmatprep.subr.mxu0 0.0
        %642 = vmatpush2.msra.mxu0 0.0
        %643 = vmatprep.subr.mxu0 0.0
        %644 = vmatpush2.msra.mxu0 0.0
        %645 = vmatprep.subr.mxu0 0.0
        %646 = vmatpush2.msra.mxu0 0.0
        %647 = vmatprep.subr.mxu0 0.0
        %648 = vmatpush2.msra.mxu0 0.0
        %649 = vmatprep.subr.mxu0 0.0
        %650 = vmatpush2.msra.mxu0 0.0
        %651 = vmatprep.subr.mxu0 0.0
        %652 = vmatpush2.msra.mxu0 0.0
        %653 = vmatprep.subr.mxu0 0.0
        %654 = vmatpush2.msra.mxu0 0.0
        %655 = vmatprep.subr.mxu0 0.0
        %656 = vmatpush2.msra.mxu0 0.0
        %657 = vmatprep.subr.mxu0 0.0
        %658 = vmatpush2.msra.mxu0 0.0
        %659 = vmatprep.subr.mxu0 0.0
        %660 = vmatpush2.msra.mxu0 0.0
        %661 = vmatprep.subr.mxu0 0.0
        %662 = vmatpush2.msra.mxu0 0.0
        %663 = vmatprep.subr.mxu0 0.0
        %664 = vmatpush2.msra.mxu0 0.0
        %665 = vmatprep.mubr.f32.mxu0 0.0
        %666 = vmatmul.mubr.f32.gmra.mxu0 %v599
        %v667 = vpop.f32.mrf.mxu0
        %v668 = vadd.f32 %v595, %v667
        %v669 = vpop.f32.mrf.mxu0
        %670 = vdwg.mxu0
        %671 = vst [vmem:[%s386] sm:$0xff] %v668
        %s672 = sand.u32 %s234, 1
        %s673 = scalar_lea.sflag [#allocation4], %s672
        %s674 = sand.u32 %s234, 1
        %s675 = smul.addr %s674, 8
        %s676 = scalar_lea.vmem [#allocation7], %s675
        // Predicated region
        $region61: #{tpu_custom_call.1} parent=51 // pred_check
          %p677 = pneg %p244
        $region62: #{tpu_custom_call.1} parent=51 // pred_check_branch
          %679 = sbr.rel (%p677) target = $region64
        $region63: #{tpu_custom_call.1} parent=51 // pred_region
          %s681 = ssub.s32 128, 128
          %682 = vsyncadd %s673, %s681
          %s683 = sadd.s32 %s33, %s32
          %s684 = smul.addr %s683, 128
          %s685 = scalar_lea.hbm %s8, %s684
          %s687 = sshll.u32 %s676, 4
          %s688 = int_to_ptr.vmem [resolvable:$true] %s687
          %690 = dma.vmem_to_hbm [thread:$0]  %s688, 128, %s685, %s673
        $region64: #{tpu_custom_call.1} parent=51 // pred_fallthru
          _
      $region52: #{tpu_custom_call.1} parent=5 // pred_fallthru
        _
      %p691 = scmp.le.s32.totalorder 2, %s23
      // Predicated region
      $region65: #{tpu_custom_call.1} parent=5 // pred_check
        %p692 = pneg %p691
      $region66: #{tpu_custom_call.1} parent=5 // pred_check_branch
        %694 = sbr.rel (%p692) target = $region68
      $region67: #{tpu_custom_call.1} parent=5 // pred_region
        %s695 = ssub.s32 %s23, 2
        // Predicated region
        $region69: #{tpu_custom_call.1} parent=67 // pred_check
          %p696 = pneg %p250
        $region70: #{tpu_custom_call.1} parent=67 // pred_check_branch
          %698 = sbr.rel (%p696) target = $region72
        $region71: #{tpu_custom_call.1} parent=67 // pred_region
          %s699 = sand.u32 %s235, 1
          %s700 = scalar_lea.sflag [#allocation4], %s699
          %s701 = sand.u32 %s235, 1
          %s702 = smul.addr %s701, 8
          %s703 = scalar_lea.vmem [#allocation7], %s702
          %704 = dma.done %s700, 128
        $region72: #{tpu_custom_call.1} parent=67 // pred_fallthru
          _
      $region68: #{tpu_custom_call.1} parent=5 // pred_fallthru
        _
    $region6: #{tpu_custom_call.1} parent=1 // loop_footer
      %s27 = sadd.s32 1, %s23
    $region7: #{tpu_custom_call.1} parent=1 // loop_footer_branch
      %22 = sbr.rel target = $region3
    $region8: #{tpu_custom_call.1} parent=1 // loop_exit
      _
    %705 = vsyncpa [#allocation3], 1
    %s706 = scalar_lea.sflag [#allocation3], 1
    %707 = vsyncpa %s706, 1
    %708 = vsyncpa [#allocation6], 1
    %s709 = scalar_lea.sflag [#allocation6], 1
    %710 = vsyncpa %s709, 1
    %711 = vsyncpa [#allocation4], 1
    %s712 = scalar_lea.sflag [#allocation4], 1
    %713 = vsyncpa %s712, 1

</llo_original>
